<compile_context>
chip_gen: v6e
topology: v6e:2x2x1
jax: 0.10.0
libtpu: 0.0.40
codegen_flags: <defaults>
</compile_context>

<pallas_src>
import functools

import numpy as np
import jax
import jax.numpy as jnp
from jax.experimental import pallas as pl
from jax.experimental.pallas import tpu as pltpu

_WIN = 11
_C1 = 0.01 * 0.01            # images rescaled to [0, 1] -> data_range folded in
_C2 = 0.03 * 0.03
_COV = (_WIN * _WIN) / (_WIN * _WIN - 1.0)   # sample-covariance norm = 121/120


def _ssim_sum_kernel(x_ref, y_ref, fh_ref, g_ref, out_ref, acc_ref, *, hc, hcp):
    """Accumulates sum of the cropped SSIM map over all (n, c) slices."""
    i = pl.program_id(0)

    @pl.when(i == 0)
    def _():
        acc_ref[...] = jnp.zeros_like(acc_ref)

    x = x_ref[...]                                   # (H, B*W) f32, slices along lanes
    y = y_ref[...]

    # 5 moment maps stacked along sublanes -> one fused matmul per filter stage.
    maps = jnp.concatenate([x, y, x * x, y * y, x * y], axis=0)          # (5H, B*W)
    t = jnp.dot(fh_ref[...], maps, preferred_element_type=jnp.float32)   # (5*hcp, B*W)
    u = jnp.dot(t, g_ref[...], preferred_element_type=jnp.float32)       # (5*hcp, B*Wc)

    ux = u[0 * hcp:1 * hcp]
    uy = u[1 * hcp:2 * hcp]
    uxx = u[2 * hcp:3 * hcp]
    uyy = u[3 * hcp:4 * hcp]
    uxy = u[4 * hcp:5 * hcp]

    vx = _COV * (uxx - ux * ux)
    vy = _COV * (uyy - uy * uy)
    vxy = _COV * (uxy - ux * uy)

    a1 = 2.0 * ux * uy + _C1
    a2 = 2.0 * vxy + _C2
    b1 = ux * ux + uy * uy + _C1
    b2 = vx + vy + _C2
    s = (a1 * a2) / (b1 * b2)        # (hcp, B*Wc); padded rows are exactly 1.0

    # elementwise VPU accumulate every step; expensive reduce only once at the end
    acc_ref[...] += s

    @pl.when(i == pl.num_programs(0) - 1)
    def _():
        out_ref[...] = jnp.zeros_like(out_ref) + jnp.sum(acc_ref[0:hc, :])


def loss_spa(imgs, gts, win_size=_WIN):
    """imgs, gts: (N, C, H, W) in [0, 1). Returns scalar mean(1 - SSIM)."""
    N, C, H, W = imgs.shape
    assert H >= win_size and W >= win_size, "win_size must fit in the image"
    hc = H - win_size + 1            # cropped SSIM-map height
    wc = W - win_size + 1            # cropped SSIM-map width
    hcp = ((hc + 7) // 8) * 8        # sublane-aligned padded map height
    nc = N * C

    # Slices per grid step: keep the block lane dimension at 128 when possible.
    if 128 % W == 0:
        b = max(1, 128 // W)
        g = pl.cdiv(nc, b)
    else:
        b, g = nc, 1                 # fall back to a single big block
    ncp = b * g
    n_pad = ncp - nc

    inv = np.float32(1.0 / win_size)

    # H-stage: valid 11-tap box filter along H as a left matmul, replicated
    # block-diagonally over the 5 moment maps, rows padded to a multiple of 8.
    fh = np.zeros((hcp, H), np.float32)
    for r in range(hc):
        fh[r, r:r + win_size] = inv
    fh5 = np.kron(np.eye(5, dtype=np.float32), fh)            # (5*hcp, 5*H)

    # W-stage: valid box filter along W as a right matmul, block-diagonal over
    # the b slices living side by side in the lane dimension.
    fw = np.zeros((W, wc), np.float32)
    for c in range(wc):
        fw[c:c + win_size, c] = inv
    gmat = np.kron(np.eye(b, dtype=np.float32), fw)           # (b*W, b*wc)

    def prep(a):
        # uint8 quantisation of tensor2image, rescaled to [0, 1]; lay the
        # (slice, w) axes out along lanes so all filtering is plain matmuls.
        a = jnp.floor(a.astype(jnp.float32) * 255.0) * np.float32(1.0 / 255.0)
        a = a.reshape(nc, H, W)
        if n_pad:
            a = jnp.concatenate([a, jnp.zeros((n_pad, H, W), jnp.float32)], axis=0)
        return jnp.transpose(a, (1, 0, 2)).reshape(H, ncp * W)

    x = prep(imgs)
    y = prep(gts)

    kernel = functools.partial(_ssim_sum_kernel, hc=hc, hcp=hcp)

    total = pl.pallas_call(
        kernel,
        out_shape=jax.ShapeDtypeStruct((1, 1), jnp.float32),
        grid_spec=pltpu.PrefetchScalarGridSpec(
            num_scalar_prefetch=0,
            grid=(g,),
            in_specs=[
                pl.BlockSpec((H, b * W), lambda i: (0, i)),        # imgs block
                pl.BlockSpec((H, b * W), lambda i: (0, i)),        # gts block
                pl.BlockSpec((5 * hcp, 5 * H), lambda i: (0, 0)),  # H-stage basis
                pl.BlockSpec((b * W, b * wc), lambda i: (0, 0)),   # W-stage basis
            ],
            out_specs=pl.BlockSpec((1, 1), lambda i: (0, 0)),
            scratch_shapes=[pltpu.VMEM((hcp, b * wc), jnp.float32)],
        ),
        # Grid is a reduction over one shared accumulator.
        # TODO(synk): on v7x, split this grid across the 2 TensorCores with
        # per-core partial sums combined in the wrapper.
        compiler_params=pltpu.CompilerParams(
            dimension_semantics=("arbitrary",)),
    )(x, y, jnp.asarray(fh5), jnp.asarray(gmat))

    # Zero-padded slices are identical in both inputs -> SSIM exactly 1 per
    # cropped pixel; remove their contribution analytically.
    ssim_sum = total[0, 0] - np.float32(n_pad * hc * wc)
    return 1.0 - ssim_sum / np.float32(nc * hc * wc)


def loss_spa_ref(imgs, gts, win_size=_WIN):
    """Pure-JAX reference mirroring skimage.compare_ssim with uniform window."""
    N, C, H, W = imgs.shape
    q = lambda a: jnp.floor(a.astype(jnp.float32) * 255.0) / 255.0
    x = q(imgs).reshape(N * C, 1, H, W)
    y = q(gts).reshape(N * C, 1, H, W)
    k = jnp.ones((1, 1, win_size, win_size), jnp.float32) / (win_size * win_size)
    f = lambda a: jax.lax.conv_general_dilated(
        a, k, (1, 1), 'VALID', dimension_numbers=('NCHW', 'OIHW', 'NCHW'))
    ux, uy = f(x), f(y)
    uxx, uyy, uxy = f(x * x), f(y * y), f(x * y)
    cov = (win_size ** 2) / (win_size ** 2 - 1.0)
    vx = cov * (uxx - ux * ux)
    vy = cov * (uyy - uy * uy)
    vxy = cov * (uxy - ux * uy)
    s = ((2.0 * ux * uy + _C1) * (2.0 * vxy + _C2)) / (
        (ux * ux + uy * uy + _C1) * (vx + vy + _C2))
    mssim = s.reshape(N, -1).mean(axis=1)
    return jnp.mean(1.0 - mssim)


if __name__ == "__main__":
    key = jax.random.PRNGKey(0)
    k1, k2 = jax.random.split(key)
    N, C, H, W = 2, 4, 16, 16
    imgs = jax.random.uniform(k1, (N, C, H, W), dtype=jnp.float32)
    gts = jax.random.uniform(k2, (N, C, H, W), dtype=jnp.float32)

    out = loss_spa(imgs, gts)
    out = jax.block_until_ready(out)

    ref = loss_spa_ref(imgs, gts)
    assert jnp.allclose(out, ref, rtol=1e-4, atol=1e-4), (out, ref)

    print("KERNEL_OK")
</pallas_src>

<mosaic_0001>
module attributes {stable_mosaic.version = 11 : i64} {
  func.func @_ssim_sum_kernel(%arg0: i32, %arg1: memref<16x128xf32, #tpu.memory_space<vmem>>, %arg2: memref<16x128xf32, #tpu.memory_space<vmem>>, %arg3: memref<40x80xf32, #tpu.memory_space<vmem>>, %arg4: memref<128x48xf32, #tpu.memory_space<vmem>>, %arg5: memref<1x1xf32, #tpu.memory_space<vmem>>, %arg6: memref<8x48xf32, #tpu.memory_space<vmem>>) attributes {dimension_semantics = [#tpu.dimension_semantics<arbitrary>], iteration_bounds = array<i64: 1>, scalar_prefetch = 0 : i64, scratch_operands = 1 : i64, tpu.core_type = #tpu.core_type<tc>, window_params = [{transform_indices = @transform_0, window_bounds = array<i64: 16, 128>}, {transform_indices = @transform_1, window_bounds = array<i64: 16, 128>}, {pipeline_mode = #tpu.pipeline_mode<synchronous>, transform_indices = @transform_2, window_bounds = array<i64: 40, 80>}, {pipeline_mode = #tpu.pipeline_mode<synchronous>, transform_indices = @transform_3, window_bounds = array<i64: 128, 48>}, {pipeline_mode = #tpu.pipeline_mode<synchronous>, transform_indices = @transform_4, window_bounds = array<i64: 1, 1>}]} {
    %c0_i32 = arith.constant 0 : i32
    %0 = arith.cmpi eq, %arg0, %c0_i32 : i32
    %1 = arith.extui %0 : i1 to i32
    %c0_i32_0 = arith.constant 0 : i32
    %2 = arith.cmpi ne, %1, %c0_i32_0 : i32
    scf.if %2 {
      %cst_24 = arith.constant 0.000000e+00 : f32
      %56 = vector.broadcast %cst_24 : f32 to vector<8x48xf32>
      %c0_25 = arith.constant 0 : index
      %c0_26 = arith.constant 0 : index
      %57 = vector.load %arg6[%c0_25, %c0_26] : memref<8x48xf32, #tpu.memory_space<vmem>>, vector<8x48xf32>
      tpu.vector_store %arg6[%c0_25, %c0_26], %56 {strides = array<i32>} : memref<8x48xf32, #tpu.memory_space<vmem>>, vector<8x48xf32>,
    } else {
    }
    %c0 = arith.constant 0 : index
    %c0_1 = arith.constant 0 : index
    %3 = vector.load %arg1[%c0, %c0_1] : memref<16x128xf32, #tpu.memory_space<vmem>>, vector<16x128xf32>
    %c0_2 = arith.constant 0 : index
    %c0_3 = arith.constant 0 : index
    %4 = vector.load %arg2[%c0_2, %c0_3] : memref<16x128xf32, #tpu.memory_space<vmem>>, vector<16x128xf32>
    %5 = arith.mulf %3, %3 : vector<16x128xf32>
    %6 = arith.mulf %4, %4 : vector<16x128xf32>
    %7 = arith.mulf %3, %4 : vector<16x128xf32>
    %8 = tpu.concatenate %3, %4, %5, %6, %7 in 0 : vector<16x128xf32>, vector<16x128xf32>, vector<16x128xf32>, vector<16x128xf32>, vector<16x128xf32> -> vector<80x128xf32>
    %c0_4 = arith.constant 0 : index
    %c0_5 = arith.constant 0 : index
    %9 = vector.load %arg3[%c0_4, %c0_5] : memref<40x80xf32, #tpu.memory_space<vmem>>, vector<40x80xf32>
    %cst = arith.constant dense<0.000000e+00> : vector<40x128xf32>
    %10 = tpu.matmul %9, %8, %cst {dimension_numbers = #tpu.dot_dimension_numbers<[1], [0], [0], [1], [0, 0, 1, 1], [], []>} : vector<40x80xf32>, vector<80x128xf32>, vector<40x128xf32> -> vector<40x128xf32>
    %c0_6 = arith.constant 0 : index
    %c0_7 = arith.constant 0 : index
    %11 = vector.load %arg4[%c0_6, %c0_7] : memref<128x48xf32, #tpu.memory_space<vmem>>, vector<128x48xf32>
    %cst_8 = arith.constant dense<0.000000e+00> : vector<40x48xf32>
    %12 = tpu.matmul %10, %11, %cst_8 {dimension_numbers = #tpu.dot_dimension_numbers<[1], [0], [0], [1], [0, 0, 1, 1], [], []>} : vector<40x128xf32>, vector<128x48xf32>, vector<40x48xf32> -> vector<40x48xf32>
    %13 = vector.extract_strided_slice %12 {offsets = [0, 0], sizes = [8, 48], strides = [1, 1]} : vector<40x48xf32> to vector<8x48xf32>
    %14 = vector.extract_strided_slice %12 {offsets = [8, 0], sizes = [8, 48], strides = [1, 1]} : vector<40x48xf32> to vector<8x48xf32>
    %15 = vector.extract_strided_slice %12 {offsets = [16, 0], sizes = [8, 48], strides = [1, 1]} : vector<40x48xf32> to vector<8x48xf32>
    %16 = vector.extract_strided_slice %12 {offsets = [24, 0], sizes = [8, 48], strides = [1, 1]} : vector<40x48xf32> to vector<8x48xf32>
    %17 = vector.extract_strided_slice %12 {offsets = [32, 0], sizes = [8, 48], strides = [1, 1]} : vector<40x48xf32> to vector<8x48xf32>
    %18 = arith.mulf %13, %13 : vector<8x48xf32>
    %19 = arith.subf %15, %18 : vector<8x48xf32>
    %cst_9 = arith.constant 1.00833333 : f32
    %20 = vector.broadcast %cst_9 : f32 to vector<8x48xf32>
    %21 = arith.mulf %20, %19 : vector<8x48xf32>
    %22 = arith.mulf %14, %14 : vector<8x48xf32>
    %23 = arith.subf %16, %22 : vector<8x48xf32>
    %cst_10 = arith.constant 1.00833333 : f32
    %24 = vector.broadcast %cst_10 : f32 to vector<8x48xf32>
    %25 = arith.mulf %24, %23 : vector<8x48xf32>
    %26 = arith.mulf %13, %14 : vector<8x48xf32>
    %27 = arith.subf %17, %26 : vector<8x48xf32>
    %cst_11 = arith.constant 1.00833333 : f32
    %28 = vector.broadcast %cst_11 : f32 to vector<8x48xf32>
    %29 = arith.mulf %28, %27 : vector<8x48xf32>
    %cst_12 = arith.constant 2.000000e+00 : f32
    %30 = vector.broadcast %cst_12 : f32 to vector<8x48xf32>
    %31 = arith.mulf %30, %13 : vector<8x48xf32>
    %32 = arith.mulf %31, %14 : vector<8x48xf32>
    %cst_13 = arith.constant 9.99999974E-5 : f32
    %33 = vector.broadcast %cst_13 : f32 to vector<8x48xf32>
    %34 = arith.addf %32, %33 : vector<8x48xf32>
    %cst_14 = arith.constant 2.000000e+00 : f32
    %35 = vector.broadcast %cst_14 : f32 to vector<8x48xf32>
    %36 = arith.mulf %35, %29 : vector<8x48xf32>
    %cst_15 = arith.constant 8.99999984E-4 : f32
    %37 = vector.broadcast %cst_15 : f32 to vector<8x48xf32>
    %38 = arith.addf %36, %37 : vector<8x48xf32>
    %39 = arith.mulf %13, %13 : vector<8x48xf32>
    %40 = arith.mulf %14, %14 : vector<8x48xf32>
    %41 = arith.addf %39, %40 : vector<8x48xf32>
    %cst_16 = arith.constant 9.99999974E-5 : f32
    %42 = vector.broadcast %cst_16 : f32 to vector<8x48xf32>
    %43 = arith.addf %41, %42 : vector<8x48xf32>
    %44 = arith.addf %21, %25 : vector<8x48xf32>
    %cst_17 = arith.constant 8.99999984E-4 : f32
    %45 = vector.broadcast %cst_17 : f32 to vector<8x48xf32>
    %46 = arith.addf %44, %45 : vector<8x48xf32>
    %47 = arith.mulf %34, %38 : vector<8x48xf32>
    %48 = arith.mulf %43, %46 : vector<8x48xf32>
    %49 = arith.divf %47, %48 : vector<8x48xf32>
    %c0_18 = arith.constant 0 : index
    %c0_19 = arith.constant 0 : index
    %50 = vector.load %arg6[%c0_18, %c0_19] : memref<8x48xf32, #tpu.memory_space<vmem>>, vector<8x48xf32>
    %51 = arith.addf %50, %49 : vector<8x48xf32>
    %c0_20 = arith.constant 0 : index
    %c0_21 = arith.constant 0 : index
    %52 = vector.load %arg6[%c0_20, %c0_21] : memref<8x48xf32, #tpu.memory_space<vmem>>, vector<8x48xf32>
    tpu.vector_store %arg6[%c0_20, %c0_21], %51 {strides = array<i32>} : memref<8x48xf32, #tpu.memory_space<vmem>>, vector<8x48xf32>,
    %c0_i32_22 = arith.constant 0 : i32
    %53 = arith.cmpi eq, %arg0, %c0_i32_22 : i32
    %54 = arith.extui %53 : i1 to i32
    %c0_i32_23 = arith.constant 0 : i32
    %55 = arith.cmpi ne, %54, %c0_i32_23 : i32
    scf.if %55 {
      %cst_24 = arith.constant 0.000000e+00 : f32
      %56 = vector.broadcast %cst_24 : f32 to vector<1x1xf32>
      %c0_25 = arith.constant 0 : index
      %c0_26 = arith.constant 0 : index
      %57 = vector.load %arg6[%c0_25, %c0_26] : memref<8x48xf32, #tpu.memory_space<vmem>>, vector<6x48xf32>
      %58 = vector.shape_cast %57 : vector<6x48xf32> to vector<1x6x48xf32>
      %cst_27 = arith.constant dense<0.000000e+00> : vector<1xf32>
      %59 = vector.multi_reduction <add>, %58, %cst_27 [1, 2] : vector<1x6x48xf32> to vector<1xf32>
      %60 = vector.shape_cast %59 : vector<1xf32> to vector<1x1x1xf32>
      %61 = vector.extract %60[0, 0, 0] : f32 from vector<1x1x1xf32>
      %62 = vector.broadcast %61 : f32 to vector<1x1xf32>
      %63 = arith.addf %56, %62 : vector<1x1xf32>
      %c0_28 = arith.constant 0 : index
      %c0_29 = arith.constant 0 : index
      %64 = vector.load %arg5[%c0_28, %c0_29] : memref<1x1xf32, #tpu.memory_space<vmem>>, vector<1x1xf32>
      tpu.vector_store %arg5[%c0_28, %c0_29], %63 {strides = array<i32>} : memref<1x1xf32, #tpu.memory_space<vmem>>, vector<1x1xf32>,
    } else {
    }
    return
  }
  func.func @transform_0(%arg0: i32) -> (i32, i32) {
    %c0_i32 = arith.constant 0 : i32
    %c0_i32_0 = arith.constant 0 : i32
    return %c0_i32, %arg0 : i32, i32
  }
  func.func @transform_1(%arg0: i32) -> (i32, i32) {
    %c0_i32 = arith.constant 0 : i32
    %c0_i32_0 = arith.constant 0 : i32
    return %c0_i32, %arg0 : i32, i32
  }
  func.func @transform_2(%arg0: i32) -> (i32, i32) {
    %c0_i32 = arith.constant 0 : i32
    %c0_i32_0 = arith.constant 0 : i32
    %c0_i32_1 = arith.constant 0 : i32
    return %c0_i32, %c0_i32_0 : i32, i32
  }
  func.func @transform_3(%arg0: i32) -> (i32, i32) {
    %c0_i32 = arith.constant 0 : i32
    %c0_i32_0 = arith.constant 0 : i32
    %c0_i32_1 = arith.constant 0 : i32
    return %c0_i32, %c0_i32_0 : i32, i32
  }
  func.func @transform_4(%arg0: i32) -> (i32, i32) {
    %c0_i32 = arith.constant 0 : i32
    %c0_i32_0 = arith.constant 0 : i32
    %c0_i32_1 = arith.constant 0 : i32
    return %c0_i32, %c0_i32_0 : i32, i32
  }
}

</mosaic_0001>

<llo_original>
// kernel: tpu_custom_call.1
$region0: #{tpu_custom_call.1}
  #allocation0 [shape = 'u32[]', space=smem, size = 0x4, offset = 0x4, fixed_abs, tag = 'smem constant byte address 0x4 - core index']
  #allocation1 [shape = 'u32[144,128]{1,0:T(1,128)}', space=vmem, size = 0x12000, scoped, tag = 'internal scratch']
  #allocation2 [shape = 'f32[8,48]{1,0:T(8,128)}', space=vmem, size = 0x1000, scoped, tag = 'scratch operand']
  %s0 = inlined_call_operand.vmem [shape: f32[16,128], index: 0, kind: input, shape index: {}]
  %s1 = inlined_call_operand.vmem [shape: f32[16,128], index: 1, kind: input, shape index: {}]
  %s2 = inlined_call_operand.vmem [shape: f32[40,80], index: 2, kind: input, shape index: {}]
  %s3 = inlined_call_operand.vmem [shape: f32[128,48], index: 3, kind: input, shape index: {}]
  %s4 = inlined_call_operand.hbm [shape: f32[1,1], index: 4, kind: output, shape index: {}]
  %s5 = sld [smem:[#allocation0]]
  $region34: #{tpu_custom_call.1} parent=0
    _
  %s7 = ssub.s32 1, %s5
  %s8 = scalar_select 0, %s7, %s5
  $region1: #{tpu_custom_call.1} parent=0
    #allocation3 [shape = 'u8[512]{0}', space=vmem, size = 0x400, scoped, tag = 'output window, operand 0, single buffered']
    #allocation4 [shape = 's32[1]{0}', space=sflag, size = 0x4, scoped, tag = 'scoped memory for tpu_custom_call.1']
    %9 = vsyncpa [#allocation4], 0
    // Predicated region
    $region2: #{tpu_custom_call.1} parent=1 // pred_check
      _
    $region3: #{tpu_custom_call.1} parent=1 // pred_check_branch
      %11 = sbr.rel (0) target = $region5
    $region4: #{tpu_custom_call.1} parent=1 // pred_region
      _
    $region5: #{tpu_custom_call.1} parent=1 // pred_fallthru
      _
    // Predicated region
    $region6: #{tpu_custom_call.1} parent=1 // pred_check
      _
    $region7: #{tpu_custom_call.1} parent=1 // pred_check_branch
      %13 = sbr.rel (0) target = $region9
    $region8: #{tpu_custom_call.1} parent=1 // pred_region
      _
    $region9: #{tpu_custom_call.1} parent=1 // pred_fallthru
      _
    // Predicated region
    $region10: #{tpu_custom_call.1} parent=1 // pred_check
      _
    $region11: #{tpu_custom_call.1} parent=1 // pred_check_branch
      %15 = sbr.rel (0) target = $region13
    $region12: #{tpu_custom_call.1} parent=1 // pred_region
      _
    $region13: #{tpu_custom_call.1} parent=1 // pred_fallthru
      _
    // Predicated region
    $region14: #{tpu_custom_call.1} parent=1 // pred_check
      _
    $region15: #{tpu_custom_call.1} parent=1 // pred_check_branch
      %17 = sbr.rel (0) target = $region17
    $region16: #{tpu_custom_call.1} parent=1 // pred_region
      _
    $region17: #{tpu_custom_call.1} parent=1 // pred_fallthru
      _
    %p18 = scmp.eq.s32.totalorder 0, 0
    // Predicated region
    $region18: #{tpu_custom_call.1} parent=1 // pred_check
      %p19 = pneg %p18
    $region19: #{tpu_custom_call.1} parent=1 // pred_check_branch
      %21 = sbr.rel (%p19) target = $region21
    $region20: #{tpu_custom_call.1} parent=1 // pred_region
      %vm22 = vcmask 392192
      %23 = vst.msk [vmem:[#allocation2] sm:$0xff] %vm22, 0.0
    $region21: #{tpu_custom_call.1} parent=1 // pred_fallthru
      _
    %v24 = vld [vmem:[%s0] sm:$0xff]
    %v25 = vld [vmem:[%s0 + $0x8] sm:$0xff]
    %v26 = vld [vmem:[%s1] sm:$0xff]
    %v27 = vld [vmem:[%s1 + $0x8] sm:$0xff]
    %v28 = vmul.f32 %v24, %v24
    %v29 = vmul.f32 %v25, %v25
    %v30 = vmul.f32 %v26, %v26
    %v31 = vmul.f32 %v27, %v27
    %v32 = vmul.f32 %v24, %v26
    %v33 = vmul.f32 %v25, %v27
    %v34 = vld [vmem:[%s2] sm:$0xff]
    %v35 = vld [vmem:[%s2 + $0x8] sm:$0xff]
    %v36 = vld [vmem:[%s2 + $0x10] sm:$0xff]
    %v37 = vld [vmem:[%s2 + $0x18] sm:$0xff]
    %v38 = vld [vmem:[%s2 + $0x20] sm:$0xff]
    %vm39 = vcmask 654336
    %v41 = vsel %vm39, %v34, 0
    %v44 = vsel %vm39, %v35, 0
    %v47 = vsel %vm39, %v36, 0
    %v50 = vsel %vm39, %v37, 0
    %v53 = vsel %vm39, %v38, 0
    %55 = vmatprep.subr.mxu0 0.0
    %56 = vmatpush1.msra.mxu0 0.0
    %57 = vmatprep.subr.mxu0 0.0
    %58 = vmatpush1.msra.mxu0 0.0
    %59 = vmatprep.subr.mxu0 0.0
    %60 = vmatpush1.msra.mxu0 0.0
    %61 = vmatprep.subr.mxu0 0.0
    %62 = vmatpush1.msra.mxu0 0.0
    %63 = vmatprep.subr.mxu0 0.0
    %64 = vmatpush1.msra.mxu0 0.0
    %65 = vmatprep.subr.mxu0 0.0
    %66 = vmatpush1.msra.mxu0 0.0
    %67 = vmatprep.subr.mxu0 0.0
    %68 = vmatpush1.msra.mxu0 %v33
    %69 = vmatprep.subr.mxu0 0.0
    %70 = vmatpush1.msra.mxu0 %v32
    %71 = vmatprep.subr.mxu0 0.0
    %72 = vmatpush1.msra.mxu0 %v31
    %73 = vmatprep.subr.mxu0 0.0
    %74 = vmatpush1.msra.mxu0 %v30
    %75 = vmatprep.subr.mxu0 0.0
    %76 = vmatpush1.msra.mxu0 %v29
    %77 = vmatprep.subr.mxu0 0.0
    %78 = vmatpush1.msra.mxu0 %v28
    %79 = vmatprep.subr.mxu0 0.0
    %80 = vmatpush1.msra.mxu0 %v27
    %81 = vmatprep.subr.mxu0 0.0
    %82 = vmatpush1.msra.mxu0 %v26
    %83 = vmatprep.subr.mxu0 0.0
    %84 = vmatpush1.msra.mxu0 %v25
    %85 = vmatprep.subr.mxu0 0.0
    %86 = vmatpush1.msra.mxu0 %v24
    %87 = vmatprep.subr.mxu0 0.0
    %88 = vmatpush2.msra.mxu0 0.0
    %89 = vmatprep.subr.mxu0 0.0
    %90 = vmatpush2.msra.mxu0 0.0
    %91 = vmatprep.subr.mxu0 0.0
    %92 = vmatpush2.msra.mxu0 0.0
    %93 = vmatprep.subr.mxu0 0.0
    %94 = vmatpush2.msra.mxu0 0.0
    %95 = vmatprep.subr.mxu0 0.0
    %96 = vmatpush2.msra.mxu0 0.0
    %97 = vmatprep.subr.mxu0 0.0
    %98 = vmatpush2.msra.mxu0 0.0
    %99 = vmatprep.subr.mxu0 0.0
    %100 = vmatpush2.msra.mxu0 0.0
    %101 = vmatprep.subr.mxu0 0.0
    %102 = vmatpush2.msra.mxu0 0.0
    %103 = vmatprep.subr.mxu0 0.0
    %104 = vmatpush2.msra.mxu0 0.0
    %105 = vmatprep.subr.mxu0 0.0
    %106 = vmatpush2.msra.mxu0 0.0
    %107 = vmatprep.subr.mxu0 0.0
    %108 = vmatpush2.msra.mxu0 0.0
    %109 = vmatprep.subr.mxu0 0.0
    %110 = vmatpush2.msra.mxu0 0.0
    %111 = vmatprep.subr.mxu0 0.0
    %112 = vmatpush2.msra.mxu0 0.0
    %113 = vmatprep.subr.mxu0 0.0
    %114 = vmatpush2.msra.mxu0 0.0
    %115 = vmatprep.subr.mxu0 0.0
    %116 = vmatpush2.msra.mxu0 0.0
    %117 = vmatprep.subr.mxu0 0.0
    %118 = vmatpush2.msra.mxu0 0.0
    %119 = vmatprep.mubr.f32.mxu0 0.0
    %120 = vmatmul.mubr.f32.gmra.mxu0 %v41
    %v121 = vpop.f32.mrf.mxu0
    %v122 = vadd.f32 0.0, %v121
    %v123 = vpop.f32.mrf.mxu0
    %124 = vmatprep.mubr.f32.mxu0 0.0
    %125 = vmatmul.mubr.f32.gmra.mxu0 %v44
    %v126 = vpop.f32.mrf.mxu0
    %v127 = vadd.f32 0.0, %v126
    %v128 = vpop.f32.mrf.mxu0
    %129 = vmatprep.mubr.f32.mxu0 0.0
    %130 = vmatmul.mubr.f32.gmra.mxu0 %v47
    %v131 = vpop.f32.mrf.mxu0
    %v132 = vadd.f32 0.0, %v131
    %v133 = vpop.f32.mrf.mxu0
    %134 = vmatprep.mubr.f32.mxu0 0.0
    %135 = vmatmul.mubr.f32.gmra.mxu0 %v50
    %v136 = vpop.f32.mrf.mxu0
    %v137 = vadd.f32 0.0, %v136
    %v138 = vpop.f32.mrf.mxu0
    %139 = vmatprep.mubr.f32.mxu0 0.0
    %140 = vmatmul.mubr.f32.gmra.mxu0 %v53
    %v141 = vpop.f32.mrf.mxu0
    %v142 = vadd.f32 0.0, %v141
    %v143 = vpop.f32.mrf.mxu0
    %144 = vdwg.mxu0
    %v145 = vld [vmem:[%s3] sm:$0xff]
    %v146 = vld [vmem:[%s3 + $0x8] sm:$0xff]
    %v147 = vld [vmem:[%s3 + $0x10] sm:$0xff]
    %v148 = vld [vmem:[%s3 + $0x18] sm:$0xff]
    %v149 = vld [vmem:[%s3 + $0x20] sm:$0xff]
    %v150 = vld [vmem:[%s3 + $0x28] sm:$0xff]
    %v151 = vld [vmem:[%s3 + $0x30] sm:$0xff]
    %v152 = vld [vmem:[%s3 + $0x38] sm:$0xff]
    %v153 = vld [vmem:[%s3 + $0x40] sm:$0xff]
    %v154 = vld [vmem:[%s3 + $0x48] sm:$0xff]
    %v155 = vld [vmem:[%s3 + $0x50] sm:$0xff]
    %v156 = vld [vmem:[%s3 + $0x58] sm:$0xff]
    %v157 = vld [vmem:[%s3 + $0x60] sm:$0xff]
    %v158 = vld [vmem:[%s3 + $0x68] sm:$0xff]
    %v159 = vld [vmem:[%s3 + $0x70] sm:$0xff]
    %v160 = vld [vmem:[%s3 + $0x78] sm:$0xff]
    %161 = vmatprep.subr.mxu0 0.0
    %162 = vmatpush1.msra.mxu0 %v160
    %163 = vmatprep.subr.mxu0 0.0
    %164 = vmatpush1.msra.mxu0 %v159
    %165 = vmatprep.subr.mxu0 0.0
    %166 = vmatpush1.msra.mxu0 %v158
    %167 = vmatprep.subr.mxu0 0.0
    %168 = vmatpush1.msra.mxu0 %v157
    %169 = vmatprep.subr.mxu0 0.0
    %170 = vmatpush1.msra.mxu0 %v156
    %171 = vmatprep.subr.mxu0 0.0
    %172 = vmatpush1.msra.mxu0 %v155
    %173 = vmatprep.subr.mxu0 0.0
    %174 = vmatpush1.msra.mxu0 %v154
    %175 = vmatprep.subr.mxu0 0.0
    %176 = vmatpush1.msra.mxu0 %v153
    %177 = vmatprep.subr.mxu0 0.0
    %178 = vmatpush1.msra.mxu0 %v152
    %179 = vmatprep.subr.mxu0 0.0
    %180 = vmatpush1.msra.mxu0 %v151
    %181 = vmatprep.subr.mxu0 0.0
    %182 = vmatpush1.msra.mxu0 %v150
    %183 = vmatprep.subr.mxu0 0.0
    %184 = vmatpush1.msra.mxu0 %v149
    %185 = vmatprep.subr.mxu0 0.0
    %186 = vmatpush1.msra.mxu0 %v148
    %187 = vmatprep.subr.mxu0 0.0
    %188 = vmatpush1.msra.mxu0 %v147
    %189 = vmatprep.subr.mxu0 0.0
    %190 = vmatpush1.msra.mxu0 %v146
    %191 = vmatprep.subr.mxu0 0.0
    %192 = vmatpush1.msra.mxu0 %v145
    %193 = vmatprep.subr.mxu0 0.0
    %194 = vmatpush2.msra.mxu0 0.0
    %195 = vmatprep.subr.mxu0 0.0
    %196 = vmatpush2.msra.mxu0 0.0
    %197 = vmatprep.subr.mxu0 0.0
    %198 = vmatpush2.msra.mxu0 0.0
    %199 = vmatprep.subr.mxu0 0.0
    %200 = vmatpush2.msra.mxu0 0.0
    %201 = vmatprep.subr.mxu0 0.0
    %202 = vmatpush2.msra.mxu0 0.0
    %203 = vmatprep.subr.mxu0 0.0
    %204 = vmatpush2.msra.mxu0 0.0
    %205 = vmatprep.subr.mxu0 0.0
    %206 = vmatpush2.msra.mxu0 0.0
    %207 = vmatprep.subr.mxu0 0.0
    %208 = vmatpush2.msra.mxu0 0.0
    %209 = vmatprep.subr.mxu0 0.0
    %210 = vmatpush2.msra.mxu0 0.0
    %211 = vmatprep.subr.mxu0 0.0
    %212 = vmatpush2.msra.mxu0 0.0
    %213 = vmatprep.subr.mxu0 0.0
    %214 = vmatpush2.msra.mxu0 0.0
    %215 = vmatprep.subr.mxu0 0.0
    %216 = vmatpush2.msra.mxu0 0.0
    %217 = vmatprep.subr.mxu0 0.0
    %218 = vmatpush2.msra.mxu0 0.0
    %219 = vmatprep.subr.mxu0 0.0
    %220 = vmatpush2.msra.mxu0 0.0
    %221 = vmatprep.subr.mxu0 0.0
    %222 = vmatpush2.msra.mxu0 0.0
    %223 = vmatprep.subr.mxu0 0.0
    %224 = vmatpush2.msra.mxu0 0.0
    %225 = vmatprep.mubr.f32.mxu0 0.0
    %226 = vmatmul.mubr.f32.gmra.mxu0 %v122
    %v227 = vpop.f32.mrf.mxu0
    %v228 = vadd.f32 0.0, %v227
    %v229 = vpop.f32.mrf.mxu0
    %230 = vmatprep.mubr.f32.mxu0 0.0
    %231 = vmatmul.mubr.f32.gmra.mxu0 %v127
    %v232 = vpop.f32.mrf.mxu0
    %v233 = vadd.f32 0.0, %v232
    %v234 = vpop.f32.mrf.mxu0
    %235 = vmatprep.mubr.f32.mxu0 0.0
    %236 = vmatmul.mubr.f32.gmra.mxu0 %v132
    %v237 = vpop.f32.mrf.mxu0
    %v238 = vadd.f32 0.0, %v237
    %v239 = vpop.f32.mrf.mxu0
    %240 = vmatprep.mubr.f32.mxu0 0.0
    %241 = vmatmul.mubr.f32.gmra.mxu0 %v137
    %v242 = vpop.f32.mrf.mxu0
    %v243 = vadd.f32 0.0, %v242
    %v244 = vpop.f32.mrf.mxu0
    %245 = vmatprep.mubr.f32.mxu0 0.0
    %246 = vmatmul.mubr.f32.gmra.mxu0 %v142
    %v247 = vpop.f32.mrf.mxu0
    %v248 = vadd.f32 0.0, %v247
    %v249 = vpop.f32.mrf.mxu0
    %250 = vdwg.mxu0
    %v251 = vmul.f32 %v228, %v228
    %v252 = vsub.f32 %v238, %v251
    %v253 = vmul.f32 %v252, 1.0083333
    %v254 = vmul.f32 %v233, %v233
    %v255 = vsub.f32 %v243, %v254
    %v256 = vmul.f32 %v255, 1.0083333
    %v257 = vmul.f32 %v228, %v233
    %v258 = vsub.f32 %v248, %v257
    %v259 = vmul.f32 %v258, 1.0083333
    %v260 = vmul.f32 %v228, 2.0
    %v261 = vmul.f32 %v260, %v233
    %v262 = vadd.f32 %v261, 0.0001
    %v263 = vmul.f32 %v259, 2.0
    %v264 = vadd.f32 %v263, 0.0009
    %v265 = vadd.f32 %v251, %v254
    %v266 = vadd.f32 %v265, 0.0001
    %v267 = vadd.f32 %v253, %v256
    %v268 = vadd.f32 %v267, 0.0009
    %v269 = vmul.f32 %v262, %v264
    %v270 = vmul.f32 %v266, %v268
    %v271 = vrcp.pop %v270
    %v272 = vmul.f32 %v269, %v271
    %v273 = vld [vmem:[#allocation2] sm:$0xff]
    %v274 = vadd.f32 %v273, %v272
    %vm275 = vcmask 392192
    %276 = vst.msk [vmem:[#allocation2] sm:$0xff] %vm275, %v274
    // Predicated region
    $region22: #{tpu_custom_call.1} parent=1 // pred_check
      %p277 = pneg %p18
    $region23: #{tpu_custom_call.1} parent=1 // pred_check_branch
      %279 = sbr.rel (%p277) target = $region25
    $region24: #{tpu_custom_call.1} parent=1 // pred_region
      %v280 = vld [vmem:[#allocation2] sm:$0x3f]
      %vm281 = vcmask 390144
      %v282 = vsel %vm281, %v280, 0.0
      %283 = vadd.xlane.f32.xlu0 %v282
      %v284 = vpop.xlane.xlu0 %283
      %v285 = vrot.slane %v284, 4
      %v286 = vadd.f32 %v284, %v285
      %v287 = vrot.slane %v286, 2
      %v288 = vadd.f32 %v286, %v287
      %v289 = vrot.slane %v288, 1
      %v290 = vadd.f32 %v288, %v289
      %s291 = vtos %v290
      %v292 = vstv %s291
      %v293 = vadd.f32 %v292, 0.0
      %vm294 = vcmask 0
      %295 = vst.msk [vmem:[#allocation3] sm:$0x1] %vm294, %v293
    $region25: #{tpu_custom_call.1} parent=1 // pred_fallthru
      _
    // Predicated region
    $region26: #{tpu_custom_call.1} parent=1 // pred_check
      _
    $region27: #{tpu_custom_call.1} parent=1 // pred_check_branch
      %297 = sbr.rel (0) target = $region29
    $region28: #{tpu_custom_call.1} parent=1 // pred_region
      %s299 = ssub.s32 16, 16
      %300 = vsyncadd [#allocation4], %s299
      %s302 = sshll.u32 [#allocation3], 4
      %s303 = int_to_ptr.vmem [resolvable:$true] %s302
      %305 = dma.vmem_to_hbm [thread:$0]  %s303, 16, %s4, [#allocation4]
    $region29: #{tpu_custom_call.1} parent=1 // pred_fallthru
      _
    // Predicated region
    $region30: #{tpu_custom_call.1} parent=1 // pred_check
      _
    $region31: #{tpu_custom_call.1} parent=1 // pred_check_branch
      %307 = sbr.rel (0) target = $region33
    $region32: #{tpu_custom_call.1} parent=1 // pred_region
      %308 = dma.done [#allocation4], 16
    $region33: #{tpu_custom_call.1} parent=1 // pred_fallthru
      _
    %309 = vsyncpa [#allocation4], 1

</llo_original>
